<compile_context>
chip_gen: v5e
topology: v5e:2x2
jax: 0.10.0
libtpu: 0.0.40
codegen_flags: <defaults>
</compile_context>

<pallas_src>
import functools

import jax
import jax.numpy as jnp
from jax.experimental import pallas as pl
from jax.experimental.pallas import tpu as pltpu

_B_PAD = 8      # f32 sublane tile
_LANE = 128     # lane tile


# ---------------------------------------------------------------------------
# Kernel
# ---------------------------------------------------------------------------
def _lstm_head_kernel(in_dim, H, GW,
                      x_ref,      # (8, in_dim)          f32, batch zero-padded
                      w_ref,      # (in_dim + 3*GW, GW)  packed weight slab
                      b_ref,      # (32, GW)             packed bias slab
                      out_ref):   # (8, GW)              f32, lane-dense output
    x = x_ref[...]

    # Static, tile-aligned slices of the packed slabs (row offsets are multiples
    # of 8 / 128, so these are clean vreg-granular views).
    w0  = w_ref[0:in_dim, :]                          # layer-0 gates  (in_dim, GW)
    w1  = w_ref[in_dim:in_dim + GW, :]                # layer-1 gates  (GW, GW)
    wc1 = w_ref[in_dim + GW:in_dim + 2 * GW, :]       # classifier fc1 (GW, GW)
    wc2 = w_ref[in_dim + 2 * GW:in_dim + 3 * GW, :]   # classifier fc2 (GW, GW)

    b0  = b_ref[0:8, :]       # layer-0 gate bias (pre-broadcast to 8 rows)
    b1  = b_ref[8:16, :]      # layer-1 gate bias
    bc1 = b_ref[16:24, :]     # fc1 bias
    bc2 = b_ref[24:32, :]     # fc2 bias

    def cell(inp, w, b):
        # One LSTM cell step with zero initial (h, c).  Gate columns are packed
        # host-side as [i, g, o, g] (forget gate is exact-dropped; its slot holds
        # a mirrored copy of g so the lane-roll is direction-agnostic).
        gates = jnp.dot(inp, w, preferred_element_type=jnp.float32) + b   # (8, GW)
        s = jax.nn.sigmoid(gates)     # sigmoid(i) in lanes [0,H); sigmoid(o) in [2H,3H)
        t = jnp.tanh(gates)           # tanh(g) in lanes [H,2H) and [3H,4H)
        # Align g and o with i's lanes using full-vreg XLU rolls (no 32-lane slices).
        g_al = pltpu.roll(t, H, axis=1)        # tanh(g)    -> lanes [0,H)
        o_al = pltpu.roll(s, 2 * H, axis=1)    # sigmoid(o) -> lanes [0,H)
        c = s * g_al                           # lanes [0,H) = sigmoid(i) * tanh(g)
        return o_al * jnp.tanh(c)              # lanes [0,H) = h; other lanes finite junk
        # Junk lanes [H, GW) are killed by zero rows in the next packed weight matrix.

    h1 = cell(x, w0, b0)       # layer-0 hidden            (8, GW)
    h2 = cell(h1, w1, b1)      # layer-1 hidden == h_n[-1] (8, GW)
    z = jnp.tanh(jnp.dot(h2, wc1, preferred_element_type=jnp.float32) + bc1)
    out = jnp.dot(z, wc2, preferred_element_type=jnp.float32) + bc2
    out_ref[...] = out.astype(out_ref.dtype)   # lane-dense (8, GW) store


# ---------------------------------------------------------------------------
# Parameters
# ---------------------------------------------------------------------------
def init_params(key, in_dim, hidden_dim, n_classes):
    """Deterministic init mirroring PyTorch default shapes (uniform +/- 1/sqrt(fan))."""
    ks = jax.random.split(key, 12)
    u = lambda k, shape, bound: jax.random.uniform(
        k, shape, jnp.float32, minval=-bound, maxval=bound)

    klstm = 1.0 / float(hidden_dim) ** 0.5
    W_ih0 = u(ks[0], (4 * hidden_dim, in_dim), klstm)
    b_ih0 = u(ks[1], (4 * hidden_dim,), klstm)
    b_hh0 = u(ks[2], (4 * hidden_dim,), klstm)
    W_ih1 = u(ks[3], (4 * hidden_dim, hidden_dim), klstm)
    b_ih1 = u(ks[4], (4 * hidden_dim,), klstm)
    b_hh1 = u(ks[5], (4 * hidden_dim,), klstm)
    # NOTE: W_hh0 / W_hh1 exist in the PyTorch module but multiply the zero initial
    # hidden state (seq_len == 1), so they never affect the forward pass.

    k1 = 1.0 / float(hidden_dim) ** 0.5
    W1 = u(ks[6], (10, hidden_dim), k1)
    b1 = u(ks[7], (10,), k1)
    k2 = 1.0 / float(10) ** 0.5
    W2 = u(ks[8], (n_classes, 10), k2)
    b2 = u(ks[9], (n_classes,), k2)

    return dict(W_ih0=W_ih0, b_ih0=b_ih0, b_hh0=b_hh0,
                W_ih1=W_ih1, b_ih1=b_ih1, b_hh1=b_hh1,
                W1=W1, b1=b1, W2=W2, b2=b2)


def prepare_params(params, in_dim, hidden_dim, n_classes,
                   weight_dtype=jnp.float32):
    """ONE-TIME packing of PyTorch-layout params into two lane-dense slabs.

    Weight slab : (in_dim + 3*GW, GW)  rows = [W0p ; W1p ; Wc1p ; Wc2p]
    Bias slab   : (32, GW)             rows = [b0 ; b1 ; bc1 ; bc2], each broadcast to 8.

    Gate columns are reordered to [i, g, o, g]; the forget gate is dropped (exact,
    since c0 == 0) and its slot reused for a mirrored g copy so the in-kernel lane
    roll is rotation-direction agnostic.  weight_dtype=jnp.bfloat16 halves weight
    DMA bytes on v6e/v7x; keep f32 on v5e.
    """
    H = hidden_dim
    GW = 4 * H
    if GW % _LANE != 0:
        # The mirrored-gate packing assumes 4*H is lane-aligned (true for H=32 here).
        raise NotImplementedError("prepare_params requires hidden_dim % 32 == 0")
    if in_dim % 8 != 0:
        raise NotImplementedError("prepare_params requires in_dim % 8 == 0")

    def pack_gate_w(W_ih, rows):
        # W_ih: (4H, K) in PyTorch gate order [i, f, g, o] along rows.
        K = W_ih.shape[1]
        Wi = W_ih[0 * H:1 * H].T
        Wg = W_ih[2 * H:3 * H].T
        Wo = W_ih[3 * H:4 * H].T
        out = jnp.zeros((rows, GW), jnp.float32)
        out = out.at[:K, 0 * H:1 * H].set(Wi)
        out = out.at[:K, 1 * H:2 * H].set(Wg)
        out = out.at[:K, 2 * H:3 * H].set(Wo)
        out = out.at[:K, 3 * H:4 * H].set(Wg)   # mirrored copy of g
        return out

    def pack_gate_b(b_ih, b_hh):
        b = b_ih + b_hh
        out = jnp.zeros((GW,), jnp.float32)
        out = out.at[0 * H:1 * H].set(b[0 * H:1 * H])    # i
        out = out.at[1 * H:2 * H].set(b[2 * H:3 * H])    # g
        out = out.at[2 * H:3 * H].set(b[3 * H:4 * H])    # o
        out = out.at[3 * H:4 * H].set(b[2 * H:3 * H])    # g (mirror)
        return out

    W0p = pack_gate_w(params["W_ih0"], in_dim)
    W1p = pack_gate_w(params["W_ih1"], GW)     # rows [H, GW) stay 0 -> kill junk lanes
    Wc1p = jnp.zeros((GW, GW), jnp.float32).at[:H, :10].set(params["W1"].T)
    Wc2p = jnp.zeros((GW, GW), jnp.float32).at[:10, :n_classes].set(params["W2"].T)

    b0p = pack_gate_b(params["b_ih0"], params["b_hh0"])
    b1p = pack_gate_b(params["b_ih1"], params["b_hh1"])
    bc1p = jnp.zeros((GW,), jnp.float32).at[:10].set(params["b1"])
    bc2p = jnp.zeros((GW,), jnp.float32).at[:n_classes].set(params["b2"])

    w_slab = jnp.concatenate([W0p, W1p, Wc1p, Wc2p], axis=0).astype(weight_dtype)
    b_slab = jnp.concatenate(
        [jnp.broadcast_to(b[None, :], (_B_PAD, GW)) for b in (b0p, b1p, bc1p, bc2p)],
        axis=0).astype(jnp.float32)

    return dict(w_slab=w_slab, b_slab=b_slab, in_dim=in_dim, hidden_dim=H,
                n_classes=n_classes, GW=GW)


# ---------------------------------------------------------------------------
# Forward wrapper
# ---------------------------------------------------------------------------
def my_lstm_forward(x, packed):
    """Forward pass of my_LSTM.  Assumes seq_len == 1 with zero (h0, c0), which is
    exactly what the PyTorch module's `x.view(len(x), 1, -1)` guarantees."""
    B = x.shape[0]
    in_dim = packed["in_dim"]
    H = packed["hidden_dim"]
    GW = packed["GW"]
    C = packed["n_classes"]

    xf = x.reshape(B, -1).astype(jnp.float32)      # == x.view(len(x), 1, -1), seq len 1
    if xf.shape[1] != in_dim:
        raise ValueError(f"expected {in_dim} features, got {xf.shape[1]}")
    if B > _B_PAD:
        # For larger batches add a grid over batch rows (parallel on v7x megacore).
        raise NotImplementedError("this script supports B <= 8")
    x_pad = jnp.zeros((_B_PAD, in_dim), jnp.float32).at[:B, :].set(xf)

    w_slab = packed["w_slab"]
    b_slab = packed["b_slab"]
    vmem = pl.BlockSpec(memory_space=pltpu.MemorySpace.VMEM)
    kernel = functools.partial(_lstm_head_kernel, in_dim, H, GW)

    cost = pl.CostEstimate(
        flops=2 * _B_PAD * (in_dim * GW + 3 * GW * GW),
        transcendentals=7 * _B_PAD * GW,
        bytes_accessed=int(x_pad.size * 4
                           + w_slab.size * w_slab.dtype.itemsize
                           + b_slab.size * 4
                           + _B_PAD * GW * 4),
    )

    out_pad = pl.pallas_call(
        kernel,
        out_shape=jax.ShapeDtypeStruct((_B_PAD, GW), jnp.float32),
        in_specs=[vmem, vmem, vmem],
        out_specs=vmem,
        cost_estimate=cost,
    )(x_pad, w_slab, b_slab)

    return out_pad[:B, :C]


# ---------------------------------------------------------------------------
# Pure-JAX reference (same math, original PyTorch-layout params)
# ---------------------------------------------------------------------------
def _reference_forward(x, params):
    B = x.shape[0]
    xf = x.reshape(B, -1).astype(jnp.float32)
    hp = jax.lax.Precision.HIGHEST

    def cell(inp, W_ih, b_ih, b_hh):
        g = jnp.dot(inp, W_ih.T, precision=hp) + b_ih + b_hh
        i, f, gg, o = jnp.split(g, 4, axis=-1)
        c = jax.nn.sigmoid(i) * jnp.tanh(gg)           # c0 == 0 -> forget gate inert
        return jax.nn.sigmoid(o) * jnp.tanh(c)

    h1 = cell(xf, params["W_ih0"], params["b_ih0"], params["b_hh0"])
    h2 = cell(h1, params["W_ih1"], params["b_ih1"], params["b_hh1"])
    z = jnp.tanh(jnp.dot(h2, params["W1"].T, precision=hp) + params["b1"])
    return jnp.dot(z, params["W2"].T, precision=hp) + params["b2"]


if __name__ == "__main__":
    B, C_in, S = 2, 4, 16                 # input x: (2, 4, 16, 16) -> in_dim = 1024
    in_dim = C_in * S * S
    hidden_dim = 32
    n_classes = 5

    key = jax.random.PRNGKey(0)
    kx, kp = jax.random.split(key)
    x = jax.random.normal(kx, (B, C_in, S, S), dtype=jnp.float32)

    params = init_params(kp, in_dim, hidden_dim, n_classes)
    packed = prepare_params(params, in_dim, hidden_dim, n_classes)
    jax.block_until_ready((packed["w_slab"], packed["b_slab"]))   # one-time packing

    out = jax.block_until_ready(my_lstm_forward(x, packed))

    ref = _reference_forward(x, params)
    assert out.shape == (B, n_classes)
    assert jnp.allclose(out, ref, atol=2e-4, rtol=2e-4), "mismatch vs reference"
    print("KERNEL_OK")
</pallas_src>

<mosaic_0001>
module attributes {stable_mosaic.version = 11 : i64} {
  func.func @_lstm_head_kernel(%arg0: memref<8x1024xf32, #tpu.memory_space<vmem>>, %arg1: memref<1408x128xf32, #tpu.memory_space<vmem>>, %arg2: memref<32x128xf32, #tpu.memory_space<vmem>>, %arg3: memref<8x128xf32, #tpu.memory_space<vmem>>) attributes {dimension_semantics = [], scalar_prefetch = 0 : i64, scratch_operands = 0 : i64, tpu.core_type = #tpu.core_type<tc>} {
    %c0 = arith.constant 0 : index
    %c0_0 = arith.constant 0 : index
    %0 = vector.load %arg0[%c0, %c0_0] : memref<8x1024xf32, #tpu.memory_space<vmem>>, vector<8x1024xf32>
    %c0_1 = arith.constant 0 : index
    %c0_2 = arith.constant 0 : index
    %1 = vector.load %arg1[%c0_1, %c0_2] : memref<1408x128xf32, #tpu.memory_space<vmem>>, vector<1024x128xf32>
    %c1024 = arith.constant 1024 : index
    %c0_3 = arith.constant 0 : index
    %2 = vector.load %arg1[%c1024, %c0_3] : memref<1408x128xf32, #tpu.memory_space<vmem>>, vector<128x128xf32>
    %c1152 = arith.constant 1152 : index
    %c0_4 = arith.constant 0 : index
    %3 = vector.load %arg1[%c1152, %c0_4] : memref<1408x128xf32, #tpu.memory_space<vmem>>, vector<128x128xf32>
    %c1280 = arith.constant 1280 : index
    %c0_5 = arith.constant 0 : index
    %4 = vector.load %arg1[%c1280, %c0_5] : memref<1408x128xf32, #tpu.memory_space<vmem>>, vector<128x128xf32>
    %c0_6 = arith.constant 0 : index
    %c0_7 = arith.constant 0 : index
    %5 = vector.load %arg2[%c0_6, %c0_7] : memref<32x128xf32, #tpu.memory_space<vmem>>, vector<8x128xf32>
    %c8 = arith.constant 8 : index
    %c0_8 = arith.constant 0 : index
    %6 = vector.load %arg2[%c8, %c0_8] : memref<32x128xf32, #tpu.memory_space<vmem>>, vector<8x128xf32>
    %c16 = arith.constant 16 : index
    %c0_9 = arith.constant 0 : index
    %7 = vector.load %arg2[%c16, %c0_9] : memref<32x128xf32, #tpu.memory_space<vmem>>, vector<8x128xf32>
    %c24 = arith.constant 24 : index
    %c0_10 = arith.constant 0 : index
    %8 = vector.load %arg2[%c24, %c0_10] : memref<32x128xf32, #tpu.memory_space<vmem>>, vector<8x128xf32>
    %cst = arith.constant dense<0.000000e+00> : vector<8x128xf32>
    %9 = tpu.matmul %0, %1, %cst {dimension_numbers = #tpu.dot_dimension_numbers<[1], [0], [0], [1], [0, 0, 1, 1], [], []>} : vector<8x1024xf32>, vector<1024x128xf32>, vector<8x128xf32> -> vector<8x128xf32>
    %10 = arith.addf %9, %5 : vector<8x128xf32>
    %11 = arith.negf %10 : vector<8x128xf32>
    %12 = math.exp %11 : vector<8x128xf32>
    %cst_11 = arith.constant 1.000000e+00 : f32
    %13 = vector.broadcast %cst_11 : f32 to vector<8x128xf32>
    %14 = arith.addf %13, %12 : vector<8x128xf32>
    %15 = arith.divf %13, %14 : vector<8x128xf32>
    %16 = math.tanh %10 : vector<8x128xf32>
    %c32_i32 = arith.constant 32 : i32
    %17 = tpu.dynamic_rotate %16 by %c32_i32 dim 1 : vector<8x128xf32>, i32 -> vector<8x128xf32>
    %c64_i32 = arith.constant 64 : i32
    %18 = tpu.dynamic_rotate %15 by %c64_i32 dim 1 : vector<8x128xf32>, i32 -> vector<8x128xf32>
    %19 = arith.mulf %15, %17 : vector<8x128xf32>
    %20 = math.tanh %19 : vector<8x128xf32>
    %21 = arith.mulf %18, %20 : vector<8x128xf32>
    %cst_12 = arith.constant dense<0.000000e+00> : vector<8x128xf32>
    %22 = tpu.matmul %21, %2, %cst_12 {dimension_numbers = #tpu.dot_dimension_numbers<[1], [0], [0], [1], [0, 0, 1, 1], [], []>} : vector<8x128xf32>, vector<128x128xf32>, vector<8x128xf32> -> vector<8x128xf32>
    %23 = arith.addf %22, %6 : vector<8x128xf32>
    %24 = arith.negf %23 : vector<8x128xf32>
    %25 = math.exp %24 : vector<8x128xf32>
    %cst_13 = arith.constant 1.000000e+00 : f32
    %26 = vector.broadcast %cst_13 : f32 to vector<8x128xf32>
    %27 = arith.addf %26, %25 : vector<8x128xf32>
    %28 = arith.divf %26, %27 : vector<8x128xf32>
    %29 = math.tanh %23 : vector<8x128xf32>
    %c32_i32_14 = arith.constant 32 : i32
    %30 = tpu.dynamic_rotate %29 by %c32_i32_14 dim 1 : vector<8x128xf32>, i32 -> vector<8x128xf32>
    %c64_i32_15 = arith.constant 64 : i32
    %31 = tpu.dynamic_rotate %28 by %c64_i32_15 dim 1 : vector<8x128xf32>, i32 -> vector<8x128xf32>
    %32 = arith.mulf %28, %30 : vector<8x128xf32>
    %33 = math.tanh %32 : vector<8x128xf32>
    %34 = arith.mulf %31, %33 : vector<8x128xf32>
    %cst_16 = arith.constant dense<0.000000e+00> : vector<8x128xf32>
    %35 = tpu.matmul %34, %3, %cst_16 {dimension_numbers = #tpu.dot_dimension_numbers<[1], [0], [0], [1], [0, 0, 1, 1], [], []>} : vector<8x128xf32>, vector<128x128xf32>, vector<8x128xf32> -> vector<8x128xf32>
    %36 = arith.addf %35, %7 : vector<8x128xf32>
    %37 = math.tanh %36 : vector<8x128xf32>
    %cst_17 = arith.constant dense<0.000000e+00> : vector<8x128xf32>
    %38 = tpu.matmul %37, %4, %cst_17 {dimension_numbers = #tpu.dot_dimension_numbers<[1], [0], [0], [1], [0, 0, 1, 1], [], []>} : vector<8x128xf32>, vector<128x128xf32>, vector<8x128xf32> -> vector<8x128xf32>
    %39 = arith.addf %38, %8 : vector<8x128xf32>
    %c0_18 = arith.constant 0 : index
    %c0_19 = arith.constant 0 : index
    %40 = vector.load %arg3[%c0_18, %c0_19] : memref<8x128xf32, #tpu.memory_space<vmem>>, vector<8x128xf32>
    tpu.vector_store %arg3[%c0_18, %c0_19], %39 {strides = array<i32>} : memref<8x128xf32, #tpu.memory_space<vmem>>, vector<8x128xf32>,
    return
  }
}

</mosaic_0001>

<llo_original>
// kernel: tpu_custom_call.1
$region0: #{tpu_custom_call.1}
  #allocation0 [shape = 'u32[]', space=smem, size = 0x4, offset = 0x4, fixed_abs, tag = 'smem constant byte address 0x4 - core index']
  #allocation1 [shape = 'u32[72,128]{1,0:T(1,128)}', space=vmem, size = 0x9000, scoped, tag = 'internal scratch']
  %s0 = inlined_call_operand.hbm [shape: f32[8,1024], index: 0, kind: input, shape index: {}]
  %s1 = inlined_call_operand.hbm [shape: f32[1408,128], index: 1, kind: input, shape index: {}]
  %s2 = inlined_call_operand.hbm [shape: f32[32,128], index: 2, kind: input, shape index: {}]
  %s3 = inlined_call_operand.hbm [shape: f32[8,128], index: 3, kind: output, shape index: {}]
  %s4 = sld [smem:[#allocation0]]
  $region34: #{tpu_custom_call.1} parent=0
    _
  %s6 = ssub.s32 1, %s4
  %s7 = scalar_select 0, %s6, %s4
  $region1: #{tpu_custom_call.1} parent=0
    #allocation2 [shape = 'u8[32768]{0}', space=vmem, size = 0x8000, scoped, tag = 'input window, operand 0, single buffered']
    #allocation3 [shape = 's32[1]{0}', space=sflag, size = 0x4, scoped, tag = 'scoped memory for tpu_custom_call.1']
    #allocation4 [shape = 's32[1]{0}', space=sflag, size = 0x4, scoped, tag = 'scoped memory for tpu_custom_call.1']
    #allocation5 [shape = 'u8[720896]{0}', space=vmem, size = 0xb0000, scoped, tag = 'input window, operand 1, single buffered']
    #allocation6 [shape = 's32[1]{0}', space=sflag, size = 0x4, scoped, tag = 'scoped memory for tpu_custom_call.1']
    #allocation7 [shape = 'u8[16384]{0}', space=vmem, size = 0x4000, scoped, tag = 'input window, operand 2, single buffered']
    #allocation8 [shape = 'u8[4096]{0}', space=vmem, size = 0x1000, scoped, tag = 'output window, operand 0, single buffered']
    %8 = vsyncpa [#allocation3], 0
    %9 = vsyncpa [#allocation6], 0
    %10 = vsyncpa [#allocation4], 0
    // Predicated region
    $region2: #{tpu_custom_call.1} parent=1 // pred_check
      _
    $region3: #{tpu_custom_call.1} parent=1 // pred_check_branch
      %12 = sbr.rel (0) target = $region5
    $region4: #{tpu_custom_call.1} parent=1 // pred_region
      %14 = vsyncadd [#allocation3], 0
      %s16 = sshll.u32 %s0, 4
      %s17 = int_to_ptr.hbm [resolvable:$true] %s16
      %s18 = sshll.u32 [#allocation2], 4
      %s19 = int_to_ptr.vmem [resolvable:$true] %s18
      %21 = dma.hbm_to_vmem [thread:$0]  %s17, 1024, %s19, [#allocation3]
    $region5: #{tpu_custom_call.1} parent=1 // pred_fallthru
      _
    // Predicated region
    $region6: #{tpu_custom_call.1} parent=1 // pred_check
      _
    $region7: #{tpu_custom_call.1} parent=1 // pred_check_branch
      %23 = sbr.rel (0) target = $region9
    $region8: #{tpu_custom_call.1} parent=1 // pred_region
      %25 = vsyncadd [#allocation6], 0
      %s26 = sshll.u32 %s1, 4
      %s27 = int_to_ptr.hbm [resolvable:$true] %s26
      %s28 = sshll.u32 [#allocation5], 4
      %s29 = int_to_ptr.vmem [resolvable:$true] %s28
      %34 = dma.hbm_to_vmem [thread:$0]  %s27, 22528, %s29, [#allocation6], 128, 128, 8
    $region9: #{tpu_custom_call.1} parent=1 // pred_fallthru
      _
    // Predicated region
    $region10: #{tpu_custom_call.1} parent=1 // pred_check
      _
    $region11: #{tpu_custom_call.1} parent=1 // pred_check_branch
      %36 = sbr.rel (0) target = $region13
    $region12: #{tpu_custom_call.1} parent=1 // pred_region
      %38 = vsyncadd [#allocation6], 0
      %s39 = sshll.u32 %s2, 4
      %s40 = int_to_ptr.hbm [resolvable:$true] %s39
      %s41 = sshll.u32 [#allocation7], 4
      %s42 = int_to_ptr.vmem [resolvable:$true] %s41
      %47 = dma.hbm_to_vmem [thread:$0]  %s40, 512, %s42, [#allocation6], 128, 128, 8
    $region13: #{tpu_custom_call.1} parent=1 // pred_fallthru
      _
    // Predicated region
    $region14: #{tpu_custom_call.1} parent=1 // pred_check
      _
    $region15: #{tpu_custom_call.1} parent=1 // pred_check_branch
      %49 = sbr.rel (0) target = $region17
    $region16: #{tpu_custom_call.1} parent=1 // pred_region
      %51 = dma.done [#allocation3], 1024
    $region17: #{tpu_custom_call.1} parent=1 // pred_fallthru
      _
    // Predicated region
    $region18: #{tpu_custom_call.1} parent=1 // pred_check
      _
    $region19: #{tpu_custom_call.1} parent=1 // pred_check_branch
      %53 = sbr.rel (0) target = $region21
    $region20: #{tpu_custom_call.1} parent=1 // pred_region
      %55 = dma.done [#allocation6], 22528
    $region21: #{tpu_custom_call.1} parent=1 // pred_fallthru
      _
    // Predicated region
    $region22: #{tpu_custom_call.1} parent=1 // pred_check
      _
    $region23: #{tpu_custom_call.1} parent=1 // pred_check_branch
      %57 = sbr.rel (0) target = $region25
    $region24: #{tpu_custom_call.1} parent=1 // pred_region
      %59 = dma.done [#allocation6], 512
    $region25: #{tpu_custom_call.1} parent=1 // pred_fallthru
      _
    %v60 = vld [vmem:[#allocation2] sm:$0xff]
    %v61 = vld [vmem:[#allocation2 + $0x8] sm:$0xff]
    %v62 = vld [vmem:[#allocation2 + $0x10] sm:$0xff]
    %v63 = vld [vmem:[#allocation2 + $0x18] sm:$0xff]
    %v64 = vld [vmem:[#allocation2 + $0x20] sm:$0xff]
    %v65 = vld [vmem:[#allocation2 + $0x28] sm:$0xff]
    %v66 = vld [vmem:[#allocation2 + $0x30] sm:$0xff]
    %v67 = vld [vmem:[#allocation2 + $0x38] sm:$0xff]
    %v68 = vld [vmem:[#allocation5] sm:$0xff]
    %v69 = vld [vmem:[#allocation5 + $0x8] sm:$0xff]
    %v70 = vld [vmem:[#allocation5 + $0x10] sm:$0xff]
    %v71 = vld [vmem:[#allocation5 + $0x18] sm:$0xff]
    %v72 = vld [vmem:[#allocation5 + $0x20] sm:$0xff]
    %v73 = vld [vmem:[#allocation5 + $0x28] sm:$0xff]
    %v74 = vld [vmem:[#allocation5 + $0x30] sm:$0xff]
    %v75 = vld [vmem:[#allocation5 + $0x38] sm:$0xff]
    %v76 = vld [vmem:[#allocation5 + $0x40] sm:$0xff]
    %v77 = vld [vmem:[#allocation5 + $0x48] sm:$0xff]
    %v78 = vld [vmem:[#allocation5 + $0x50] sm:$0xff]
    %v79 = vld [vmem:[#allocation5 + $0x58] sm:$0xff]
    %v80 = vld [vmem:[#allocation5 + $0x60] sm:$0xff]
    %v81 = vld [vmem:[#allocation5 + $0x68] sm:$0xff]
    %v82 = vld [vmem:[#allocation5 + $0x70] sm:$0xff]
    %v83 = vld [vmem:[#allocation5 + $0x78] sm:$0xff]
    %v84 = vld [vmem:[#allocation5 + $0x80] sm:$0xff]
    %v85 = vld [vmem:[#allocation5 + $0x88] sm:$0xff]
    %v86 = vld [vmem:[#allocation5 + $0x90] sm:$0xff]
    %v87 = vld [vmem:[#allocation5 + $0x98] sm:$0xff]
    %v88 = vld [vmem:[#allocation5 + $0xa0] sm:$0xff]
    %v89 = vld [vmem:[#allocation5 + $0xa8] sm:$0xff]
    %v90 = vld [vmem:[#allocation5 + $0xb0] sm:$0xff]
    %v91 = vld [vmem:[#allocation5 + $0xb8] sm:$0xff]
    %v92 = vld [vmem:[#allocation5 + $0xc0] sm:$0xff]
    %v93 = vld [vmem:[#allocation5 + $0xc8] sm:$0xff]
    %v94 = vld [vmem:[#allocation5 + $0xd0] sm:$0xff]
    %v95 = vld [vmem:[#allocation5 + $0xd8] sm:$0xff]
    %v96 = vld [vmem:[#allocation5 + $0xe0] sm:$0xff]
    %v97 = vld [vmem:[#allocation5 + $0xe8] sm:$0xff]
    %v98 = vld [vmem:[#allocation5 + $0xf0] sm:$0xff]
    %v99 = vld [vmem:[#allocation5 + $0xf8] sm:$0xff]
    %v100 = vld [vmem:[#allocation5 + $0x100] sm:$0xff]
    %v101 = vld [vmem:[#allocation5 + $0x108] sm:$0xff]
    %v102 = vld [vmem:[#allocation5 + $0x110] sm:$0xff]
    %v103 = vld [vmem:[#allocation5 + $0x118] sm:$0xff]
    %v104 = vld [vmem:[#allocation5 + $0x120] sm:$0xff]
    %v105 = vld [vmem:[#allocation5 + $0x128] sm:$0xff]
    %v106 = vld [vmem:[#allocation5 + $0x130] sm:$0xff]
    %v107 = vld [vmem:[#allocation5 + $0x138] sm:$0xff]
    %v108 = vld [vmem:[#allocation5 + $0x140] sm:$0xff]
    %v109 = vld [vmem:[#allocation5 + $0x148] sm:$0xff]
    %v110 = vld [vmem:[#allocation5 + $0x150] sm:$0xff]
    %v111 = vld [vmem:[#allocation5 + $0x158] sm:$0xff]
    %v112 = vld [vmem:[#allocation5 + $0x160] sm:$0xff]
    %v113 = vld [vmem:[#allocation5 + $0x168] sm:$0xff]
    %v114 = vld [vmem:[#allocation5 + $0x170] sm:$0xff]
    %v115 = vld [vmem:[#allocation5 + $0x178] sm:$0xff]
    %v116 = vld [vmem:[#allocation5 + $0x180] sm:$0xff]
    %v117 = vld [vmem:[#allocation5 + $0x188] sm:$0xff]
    %v118 = vld [vmem:[#allocation5 + $0x190] sm:$0xff]
    %v119 = vld [vmem:[#allocation5 + $0x198] sm:$0xff]
    %v120 = vld [vmem:[#allocation5 + $0x1a0] sm:$0xff]
    %v121 = vld [vmem:[#allocation5 + $0x1a8] sm:$0xff]
    %v122 = vld [vmem:[#allocation5 + $0x1b0] sm:$0xff]
    %v123 = vld [vmem:[#allocation5 + $0x1b8] sm:$0xff]
    %v124 = vld [vmem:[#allocation5 + $0x1c0] sm:$0xff]
    %v125 = vld [vmem:[#allocation5 + $0x1c8] sm:$0xff]
    %v126 = vld [vmem:[#allocation5 + $0x1d0] sm:$0xff]
    %v127 = vld [vmem:[#allocation5 + $0x1d8] sm:$0xff]
    %v128 = vld [vmem:[#allocation5 + $0x1e0] sm:$0xff]
    %v129 = vld [vmem:[#allocation5 + $0x1e8] sm:$0xff]
    %v130 = vld [vmem:[#allocation5 + $0x1f0] sm:$0xff]
    %v131 = vld [vmem:[#allocation5 + $0x1f8] sm:$0xff]
    %v132 = vld [vmem:[#allocation5 + $0x200] sm:$0xff]
    %v133 = vld [vmem:[#allocation5 + $0x208] sm:$0xff]
    %v134 = vld [vmem:[#allocation5 + $0x210] sm:$0xff]
    %v135 = vld [vmem:[#allocation5 + $0x218] sm:$0xff]
    %v136 = vld [vmem:[#allocation5 + $0x220] sm:$0xff]
    %v137 = vld [vmem:[#allocation5 + $0x228] sm:$0xff]
    %v138 = vld [vmem:[#allocation5 + $0x230] sm:$0xff]
    %v139 = vld [vmem:[#allocation5 + $0x238] sm:$0xff]
    %v140 = vld [vmem:[#allocation5 + $0x240] sm:$0xff]
    %v141 = vld [vmem:[#allocation5 + $0x248] sm:$0xff]
    %v142 = vld [vmem:[#allocation5 + $0x250] sm:$0xff]
    %v143 = vld [vmem:[#allocation5 + $0x258] sm:$0xff]
    %v144 = vld [vmem:[#allocation5 + $0x260] sm:$0xff]
    %v145 = vld [vmem:[#allocation5 + $0x268] sm:$0xff]
    %v146 = vld [vmem:[#allocation5 + $0x270] sm:$0xff]
    %v147 = vld [vmem:[#allocation5 + $0x278] sm:$0xff]
    %v148 = vld [vmem:[#allocation5 + $0x280] sm:$0xff]
    %v149 = vld [vmem:[#allocation5 + $0x288] sm:$0xff]
    %v150 = vld [vmem:[#allocation5 + $0x290] sm:$0xff]
    %v151 = vld [vmem:[#allocation5 + $0x298] sm:$0xff]
    %v152 = vld [vmem:[#allocation5 + $0x2a0] sm:$0xff]
    %v153 = vld [vmem:[#allocation5 + $0x2a8] sm:$0xff]
    %v154 = vld [vmem:[#allocation5 + $0x2b0] sm:$0xff]
    %v155 = vld [vmem:[#allocation5 + $0x2b8] sm:$0xff]
    %v156 = vld [vmem:[#allocation5 + $0x2c0] sm:$0xff]
    %v157 = vld [vmem:[#allocation5 + $0x2c8] sm:$0xff]
    %v158 = vld [vmem:[#allocation5 + $0x2d0] sm:$0xff]
    %v159 = vld [vmem:[#allocation5 + $0x2d8] sm:$0xff]
    %v160 = vld [vmem:[#allocation5 + $0x2e0] sm:$0xff]
    %v161 = vld [vmem:[#allocation5 + $0x2e8] sm:$0xff]
    %v162 = vld [vmem:[#allocation5 + $0x2f0] sm:$0xff]
    %v163 = vld [vmem:[#allocation5 + $0x2f8] sm:$0xff]
    %v164 = vld [vmem:[#allocation5 + $0x300] sm:$0xff]
    %v165 = vld [vmem:[#allocation5 + $0x308] sm:$0xff]
    %v166 = vld [vmem:[#allocation5 + $0x310] sm:$0xff]
    %v167 = vld [vmem:[#allocation5 + $0x318] sm:$0xff]
    %v168 = vld [vmem:[#allocation5 + $0x320] sm:$0xff]
    %v169 = vld [vmem:[#allocation5 + $0x328] sm:$0xff]
    %v170 = vld [vmem:[#allocation5 + $0x330] sm:$0xff]
    %v171 = vld [vmem:[#allocation5 + $0x338] sm:$0xff]
    %v172 = vld [vmem:[#allocation5 + $0x340] sm:$0xff]
    %v173 = vld [vmem:[#allocation5 + $0x348] sm:$0xff]
    %v174 = vld [vmem:[#allocation5 + $0x350] sm:$0xff]
    %v175 = vld [vmem:[#allocation5 + $0x358] sm:$0xff]
    %v176 = vld [vmem:[#allocation5 + $0x360] sm:$0xff]
    %v177 = vld [vmem:[#allocation5 + $0x368] sm:$0xff]
    %v178 = vld [vmem:[#allocation5 + $0x370] sm:$0xff]
    %v179 = vld [vmem:[#allocation5 + $0x378] sm:$0xff]
    %v180 = vld [vmem:[#allocation5 + $0x380] sm:$0xff]
    %v181 = vld [vmem:[#allocation5 + $0x388] sm:$0xff]
    %v182 = vld [vmem:[#allocation5 + $0x390] sm:$0xff]
    %v183 = vld [vmem:[#allocation5 + $0x398] sm:$0xff]
    %v184 = vld [vmem:[#allocation5 + $0x3a0] sm:$0xff]
    %v185 = vld [vmem:[#allocation5 + $0x3a8] sm:$0xff]
    %v186 = vld [vmem:[#allocation5 + $0x3b0] sm:$0xff]
    %v187 = vld [vmem:[#allocation5 + $0x3b8] sm:$0xff]
    %v188 = vld [vmem:[#allocation5 + $0x3c0] sm:$0xff]
    %v189 = vld [vmem:[#allocation5 + $0x3c8] sm:$0xff]
    %v190 = vld [vmem:[#allocation5 + $0x3d0] sm:$0xff]
    %v191 = vld [vmem:[#allocation5 + $0x3d8] sm:$0xff]
    %v192 = vld [vmem:[#allocation5 + $0x3e0] sm:$0xff]
    %v193 = vld [vmem:[#allocation5 + $0x3e8] sm:$0xff]
    %v194 = vld [vmem:[#allocation5 + $0x3f0] sm:$0xff]
    %v195 = vld [vmem:[#allocation5 + $0x3f8] sm:$0xff]
    %v196 = vld [vmem:[#allocation5 + $0x400] sm:$0xff]
    %v197 = vld [vmem:[#allocation5 + $0x408] sm:$0xff]
    %v198 = vld [vmem:[#allocation5 + $0x410] sm:$0xff]
    %v199 = vld [vmem:[#allocation5 + $0x418] sm:$0xff]
    %v200 = vld [vmem:[#allocation5 + $0x420] sm:$0xff]
    %v201 = vld [vmem:[#allocation5 + $0x428] sm:$0xff]
    %v202 = vld [vmem:[#allocation5 + $0x430] sm:$0xff]
    %v203 = vld [vmem:[#allocation5 + $0x438] sm:$0xff]
    %v204 = vld [vmem:[#allocation5 + $0x440] sm:$0xff]
    %v205 = vld [vmem:[#allocation5 + $0x448] sm:$0xff]
    %v206 = vld [vmem:[#allocation5 + $0x450] sm:$0xff]
    %v207 = vld [vmem:[#allocation5 + $0x458] sm:$0xff]
    %v208 = vld [vmem:[#allocation5 + $0x460] sm:$0xff]
    %v209 = vld [vmem:[#allocation5 + $0x468] sm:$0xff]
    %v210 = vld [vmem:[#allocation5 + $0x470] sm:$0xff]
    %v211 = vld [vmem:[#allocation5 + $0x478] sm:$0xff]
    %v212 = vld [vmem:[#allocation5 + $0x480] sm:$0xff]
    %v213 = vld [vmem:[#allocation5 + $0x488] sm:$0xff]
    %v214 = vld [vmem:[#allocation5 + $0x490] sm:$0xff]
    %v215 = vld [vmem:[#allocation5 + $0x498] sm:$0xff]
    %v216 = vld [vmem:[#allocation5 + $0x4a0] sm:$0xff]
    %v217 = vld [vmem:[#allocation5 + $0x4a8] sm:$0xff]
    %v218 = vld [vmem:[#allocation5 + $0x4b0] sm:$0xff]
    %v219 = vld [vmem:[#allocation5 + $0x4b8] sm:$0xff]
    %v220 = vld [vmem:[#allocation5 + $0x4c0] sm:$0xff]
    %v221 = vld [vmem:[#allocation5 + $0x4c8] sm:$0xff]
    %v222 = vld [vmem:[#allocation5 + $0x4d0] sm:$0xff]
    %v223 = vld [vmem:[#allocation5 + $0x4d8] sm:$0xff]
    %v224 = vld [vmem:[#allocation5 + $0x4e0] sm:$0xff]
    %v225 = vld [vmem:[#allocation5 + $0x4e8] sm:$0xff]
    %v226 = vld [vmem:[#allocation5 + $0x4f0] sm:$0xff]
    %v227 = vld [vmem:[#allocation5 + $0x4f8] sm:$0xff]
    %v228 = vld [vmem:[#allocation5 + $0x500] sm:$0xff]
    %v229 = vld [vmem:[#allocation5 + $0x508] sm:$0xff]
    %v230 = vld [vmem:[#allocation5 + $0x510] sm:$0xff]
    %v231 = vld [vmem:[#allocation5 + $0x518] sm:$0xff]
    %v232 = vld [vmem:[#allocation5 + $0x520] sm:$0xff]
    %v233 = vld [vmem:[#allocation5 + $0x528] sm:$0xff]
    %v234 = vld [vmem:[#allocation5 + $0x530] sm:$0xff]
    %v235 = vld [vmem:[#allocation5 + $0x538] sm:$0xff]
    %v236 = vld [vmem:[#allocation5 + $0x540] sm:$0xff]
    %v237 = vld [vmem:[#allocation5 + $0x548] sm:$0xff]
    %v238 = vld [vmem:[#allocation5 + $0x550] sm:$0xff]
    %v239 = vld [vmem:[#allocation5 + $0x558] sm:$0xff]
    %v240 = vld [vmem:[#allocation5 + $0x560] sm:$0xff]
    %v241 = vld [vmem:[#allocation5 + $0x568] sm:$0xff]
    %v242 = vld [vmem:[#allocation5 + $0x570] sm:$0xff]
    %v243 = vld [vmem:[#allocation5 + $0x578] sm:$0xff]
    %v244 = vld [vmem:[#allocation7] sm:$0xff]
    %v245 = vld [vmem:[#allocation7 + $0x8] sm:$0xff]
    %v246 = vld [vmem:[#allocation7 + $0x10] sm:$0xff]
    %v247 = vld [vmem:[#allocation7 + $0x18] sm:$0xff]
    %248 = vmatpush.msra.mxu0 %v83
    %249 = vmatpush.msra.mxu0 %v82
    %250 = vmatpush.msra.mxu0 %v81
    %251 = vmatpush.msra.mxu0 %v80
    %252 = vmatpush.msra.mxu0 %v79
    %253 = vmatpush.msra.mxu0 %v78
    %254 = vmatpush.msra.mxu0 %v77
    %255 = vmatpush.msra.mxu0 %v76
    %256 = vmatpush.msra.mxu0 %v75
    %257 = vmatpush.msra.mxu0 %v74
    %258 = vmatpush.msra.mxu0 %v73
    %259 = vmatpush.msra.mxu0 %v72
    %260 = vmatpush.msra.mxu0 %v71
    %261 = vmatpush.msra.mxu0 %v70
    %262 = vmatpush.msra.mxu0 %v69
    %263 = vmatpush.msra.mxu0 %v68
    %264 = vmatmul.f32.gmra.mxu0 %v60
    %v265 = vpop.f32.mrf.mxu0
    %v266 = vadd.f32 %v244, %v265
    %267 = vdwg.mxu0
    %268 = vmatpush.msra.mxu0 %v99
    %269 = vmatpush.msra.mxu0 %v98
    %270 = vmatpush.msra.mxu0 %v97
    %271 = vmatpush.msra.mxu0 %v96
    %272 = vmatpush.msra.mxu0 %v95
    %273 = vmatpush.msra.mxu0 %v94
    %274 = vmatpush.msra.mxu0 %v93
    %275 = vmatpush.msra.mxu0 %v92
    %276 = vmatpush.msra.mxu0 %v91
    %277 = vmatpush.msra.mxu0 %v90
    %278 = vmatpush.msra.mxu0 %v89
    %279 = vmatpush.msra.mxu0 %v88
    %280 = vmatpush.msra.mxu0 %v87
    %281 = vmatpush.msra.mxu0 %v86
    %282 = vmatpush.msra.mxu0 %v85
    %283 = vmatpush.msra.mxu0 %v84
    %284 = vmatmul.f32.gmra.mxu0 %v61
    %v285 = vpop.f32.mrf.mxu0
    %v286 = vadd.f32 %v266, %v285
    %287 = vdwg.mxu0
    %288 = vmatpush.msra.mxu0 %v115
    %289 = vmatpush.msra.mxu0 %v114
    %290 = vmatpush.msra.mxu0 %v113
    %291 = vmatpush.msra.mxu0 %v112
    %292 = vmatpush.msra.mxu0 %v111
    %293 = vmatpush.msra.mxu0 %v110
    %294 = vmatpush.msra.mxu0 %v109
    %295 = vmatpush.msra.mxu0 %v108
    %296 = vmatpush.msra.mxu0 %v107
    %297 = vmatpush.msra.mxu0 %v106
    %298 = vmatpush.msra.mxu0 %v105
    %299 = vmatpush.msra.mxu0 %v104
    %300 = vmatpush.msra.mxu0 %v103
    %301 = vmatpush.msra.mxu0 %v102
    %302 = vmatpush.msra.mxu0 %v101
    %303 = vmatpush.msra.mxu0 %v100
    %304 = vmatmul.f32.gmra.mxu0 %v62
    %v305 = vpop.f32.mrf.mxu0
    %v306 = vadd.f32 %v286, %v305
    %307 = vdwg.mxu0
    %308 = vmatpush.msra.mxu0 %v131
    %309 = vmatpush.msra.mxu0 %v130
    %310 = vmatpush.msra.mxu0 %v129
    %311 = vmatpush.msra.mxu0 %v128
    %312 = vmatpush.msra.mxu0 %v127
    %313 = vmatpush.msra.mxu0 %v126
    %314 = vmatpush.msra.mxu0 %v125
    %315 = vmatpush.msra.mxu0 %v124
    %316 = vmatpush.msra.mxu0 %v123
    %317 = vmatpush.msra.mxu0 %v122
    %318 = vmatpush.msra.mxu0 %v121
    %319 = vmatpush.msra.mxu0 %v120
    %320 = vmatpush.msra.mxu0 %v119
    %321 = vmatpush.msra.mxu0 %v118
    %322 = vmatpush.msra.mxu0 %v117
    %323 = vmatpush.msra.mxu0 %v116
    %324 = vmatmul.f32.gmra.mxu0 %v63
    %v325 = vpop.f32.mrf.mxu0
    %v326 = vadd.f32 %v306, %v325
    %327 = vdwg.mxu0
    %328 = vmatpush.msra.mxu0 %v147
    %329 = vmatpush.msra.mxu0 %v146
    %330 = vmatpush.msra.mxu0 %v145
    %331 = vmatpush.msra.mxu0 %v144
    %332 = vmatpush.msra.mxu0 %v143
    %333 = vmatpush.msra.mxu0 %v142
    %334 = vmatpush.msra.mxu0 %v141
    %335 = vmatpush.msra.mxu0 %v140
    %336 = vmatpush.msra.mxu0 %v139
    %337 = vmatpush.msra.mxu0 %v138
    %338 = vmatpush.msra.mxu0 %v137
    %339 = vmatpush.msra.mxu0 %v136
    %340 = vmatpush.msra.mxu0 %v135
    %341 = vmatpush.msra.mxu0 %v134
    %342 = vmatpush.msra.mxu0 %v133
    %343 = vmatpush.msra.mxu0 %v132
    %344 = vmatmul.f32.gmra.mxu0 %v64
    %v345 = vpop.f32.mrf.mxu0
    %v346 = vadd.f32 %v326, %v345
    %347 = vdwg.mxu0
    %348 = vmatpush.msra.mxu0 %v163
    %349 = vmatpush.msra.mxu0 %v162
    %350 = vmatpush.msra.mxu0 %v161
    %351 = vmatpush.msra.mxu0 %v160
    %352 = vmatpush.msra.mxu0 %v159
    %353 = vmatpush.msra.mxu0 %v158
    %354 = vmatpush.msra.mxu0 %v157
    %355 = vmatpush.msra.mxu0 %v156
    %356 = vmatpush.msra.mxu0 %v155
    %357 = vmatpush.msra.mxu0 %v154
    %358 = vmatpush.msra.mxu0 %v153
    %359 = vmatpush.msra.mxu0 %v152
    %360 = vmatpush.msra.mxu0 %v151
    %361 = vmatpush.msra.mxu0 %v150
    %362 = vmatpush.msra.mxu0 %v149
    %363 = vmatpush.msra.mxu0 %v148
    %364 = vmatmul.f32.gmra.mxu0 %v65
    %v365 = vpop.f32.mrf.mxu0
    %v366 = vadd.f32 %v346, %v365
    %367 = vdwg.mxu0
    %368 = vmatpush.msra.mxu0 %v179
    %369 = vmatpush.msra.mxu0 %v178
    %370 = vmatpush.msra.mxu0 %v177
    %371 = vmatpush.msra.mxu0 %v176
    %372 = vmatpush.msra.mxu0 %v175
    %373 = vmatpush.msra.mxu0 %v174
    %374 = vmatpush.msra.mxu0 %v173
    %375 = vmatpush.msra.mxu0 %v172
    %376 = vmatpush.msra.mxu0 %v171
    %377 = vmatpush.msra.mxu0 %v170
    %378 = vmatpush.msra.mxu0 %v169
    %379 = vmatpush.msra.mxu0 %v168
    %380 = vmatpush.msra.mxu0 %v167
    %381 = vmatpush.msra.mxu0 %v166
    %382 = vmatpush.msra.mxu0 %v165
    %383 = vmatpush.msra.mxu0 %v164
    %384 = vmatmul.f32.gmra.mxu0 %v66
    %v385 = vpop.f32.mrf.mxu0
    %v386 = vadd.f32 %v366, %v385
    %387 = vdwg.mxu0
    %388 = vmatpush.msra.mxu0 %v195
    %389 = vmatpush.msra.mxu0 %v194
    %390 = vmatpush.msra.mxu0 %v193
    %391 = vmatpush.msra.mxu0 %v192
    %392 = vmatpush.msra.mxu0 %v191
    %393 = vmatpush.msra.mxu0 %v190
    %394 = vmatpush.msra.mxu0 %v189
    %395 = vmatpush.msra.mxu0 %v188
    %396 = vmatpush.msra.mxu0 %v187
    %397 = vmatpush.msra.mxu0 %v186
    %398 = vmatpush.msra.mxu0 %v185
    %399 = vmatpush.msra.mxu0 %v184
    %400 = vmatpush.msra.mxu0 %v183
    %401 = vmatpush.msra.mxu0 %v182
    %402 = vmatpush.msra.mxu0 %v181
    %403 = vmatpush.msra.mxu0 %v180
    %404 = vmatmul.f32.gmra.mxu0 %v67
    %v405 = vpop.f32.mrf.mxu0
    %v406 = vadd.f32 %v386, %v405
    %407 = vdwg.mxu0
    %v408 = vxor.u32 %v406, 2147483648
    %v409 = vmul.f32 %v408, 1.442695
    %v410 = vpow.pop %v409
    %v411 = vadd.f32 %v410, 1.0
    %v412 = vrcp.pop %v411
    %v413 = vmul.f32 %v411, %v412
    %v414 = vsub.f32 1.0, %v413
    %v415 = vmul.f32 %v412, %v414
    %v416 = vadd.f32 %v412, %v415
    %vm417 = vweird.f32 %v411
    %vm418 = vweird.f32 %v412
    %vm419 = vmor %vm417, %vm418
    %v420 = vsel %vm419, %v412, %v416
    %v421 = vand.u32 2147483647, %v411
    %vm422 = vcmp.eq.f32.partialorder %v421, 8.507059e+37
    %v423 = vand.u32 %v411, 2147483648
    %v424 = vor.u32 1.1754944e-38, %v423
    %v425 = vsel %vm422, %v424, %v420
    %v426 = vmul.f32 1.0, %v425
    %v427 = vtanh.pop %v406
    %428 = vrot.lane.b32.xlu0 %v427, 32
    %v429 = vpop.permute.xlu0 %428
    %430 = vrot.lane.b32.xlu0 %v426, 64
    %v431 = vpop.permute.xlu0 %430
    %v432 = vmul.f32 %v426, %v429
    %v433 = vtanh.pop %v432
    %v434 = vmul.f32 %v431, %v433
    %435 = vmatpush.msra.mxu0 %v211
    %436 = vmatpush.msra.mxu0 %v210
    %437 = vmatpush.msra.mxu0 %v209
    %438 = vmatpush.msra.mxu0 %v208
    %439 = vmatpush.msra.mxu0 %v207
    %440 = vmatpush.msra.mxu0 %v206
    %441 = vmatpush.msra.mxu0 %v205
    %442 = vmatpush.msra.mxu0 %v204
    %443 = vmatpush.msra.mxu0 %v203
    %444 = vmatpush.msra.mxu0 %v202
    %445 = vmatpush.msra.mxu0 %v201
    %446 = vmatpush.msra.mxu0 %v200
    %447 = vmatpush.msra.mxu0 %v199
    %448 = vmatpush.msra.mxu0 %v198
    %449 = vmatpush.msra.mxu0 %v197
    %450 = vmatpush.msra.mxu0 %v196
    %451 = vmatmul.f32.gmra.mxu0 %v434
    %v452 = vpop.f32.mrf.mxu0
    %v453 = vadd.f32 %v245, %v452
    %454 = vdwg.mxu0
    %v455 = vxor.u32 %v453, 2147483648
    %v456 = vmul.f32 %v455, 1.442695
    %v457 = vpow.pop %v456
    %v458 = vadd.f32 %v457, 1.0
    %v459 = vrcp.pop %v458
    %v460 = vmul.f32 %v458, %v459
    %v461 = vsub.f32 1.0, %v460
    %v462 = vmul.f32 %v459, %v461
    %v463 = vadd.f32 %v459, %v462
    %vm464 = vweird.f32 %v458
    %vm465 = vweird.f32 %v459
    %vm466 = vmor %vm464, %vm465
    %v467 = vsel %vm466, %v459, %v463
    %v468 = vand.u32 2147483647, %v458
    %vm469 = vcmp.eq.f32.partialorder %v468, 8.507059e+37
    %v470 = vand.u32 %v458, 2147483648
    %v471 = vor.u32 1.1754944e-38, %v470
    %v472 = vsel %vm469, %v471, %v467
    %v473 = vmul.f32 1.0, %v472
    %v474 = vtanh.pop %v453
    %475 = vrot.lane.b32.xlu0 %v474, 32
    %v476 = vpop.permute.xlu0 %475
    %477 = vrot.lane.b32.xlu0 %v473, 64
    %v478 = vpop.permute.xlu0 %477
    %v479 = vmul.f32 %v473, %v476
    %v480 = vtanh.pop %v479
    %v481 = vmul.f32 %v478, %v480
    %482 = vmatpush.msra.mxu0 %v227
    %483 = vmatpush.msra.mxu0 %v226
    %484 = vmatpush.msra.mxu0 %v225
    %485 = vmatpush.msra.mxu0 %v224
    %486 = vmatpush.msra.mxu0 %v223
    %487 = vmatpush.msra.mxu0 %v222
    %488 = vmatpush.msra.mxu0 %v221
    %489 = vmatpush.msra.mxu0 %v220
    %490 = vmatpush.msra.mxu0 %v219
    %491 = vmatpush.msra.mxu0 %v218
    %492 = vmatpush.msra.mxu0 %v217
    %493 = vmatpush.msra.mxu0 %v216
    %494 = vmatpush.msra.mxu0 %v215
    %495 = vmatpush.msra.mxu0 %v214
    %496 = vmatpush.msra.mxu0 %v213
    %497 = vmatpush.msra.mxu0 %v212
    %498 = vmatmul.f32.gmra.mxu0 %v481
    %v499 = vpop.f32.mrf.mxu0
    %v500 = vadd.f32 %v246, %v499
    %501 = vdwg.mxu0
    %v502 = vtanh.pop %v500
    %503 = vmatpush.msra.mxu0 %v243
    %504 = vmatpush.msra.mxu0 %v242
    %505 = vmatpush.msra.mxu0 %v241
    %506 = vmatpush.msra.mxu0 %v240
    %507 = vmatpush.msra.mxu0 %v239
    %508 = vmatpush.msra.mxu0 %v238
    %509 = vmatpush.msra.mxu0 %v237
    %510 = vmatpush.msra.mxu0 %v236
    %511 = vmatpush.msra.mxu0 %v235
    %512 = vmatpush.msra.mxu0 %v234
    %513 = vmatpush.msra.mxu0 %v233
    %514 = vmatpush.msra.mxu0 %v232
    %515 = vmatpush.msra.mxu0 %v231
    %516 = vmatpush.msra.mxu0 %v230
    %517 = vmatpush.msra.mxu0 %v229
    %518 = vmatpush.msra.mxu0 %v228
    %519 = vmatmul.f32.gmra.mxu0 %v502
    %v520 = vpop.f32.mrf.mxu0
    %v521 = vadd.f32 %v247, %v520
    %522 = vdwg.mxu0
    %523 = vst [vmem:[#allocation8] sm:$0xff] %v521
    // Predicated region
    $region26: #{tpu_custom_call.1} parent=1 // pred_check
      _
    $region27: #{tpu_custom_call.1} parent=1 // pred_check_branch
      %525 = sbr.rel (0) target = $region29
    $region28: #{tpu_custom_call.1} parent=1 // pred_region
      %527 = vsyncadd [#allocation4], 0
      %s529 = sshll.u32 [#allocation8], 4
      %s530 = int_to_ptr.vmem [resolvable:$true] %s529
      %s531 = sshll.u32 %s3, 4
      %s532 = int_to_ptr.hbm [resolvable:$true] %s531
      %534 = dma.vmem_to_hbm [thread:$0]  %s530, 128, %s532, [#allocation4]
    $region29: #{tpu_custom_call.1} parent=1 // pred_fallthru
      _
    // Predicated region
    $region30: #{tpu_custom_call.1} parent=1 // pred_check
      _
    $region31: #{tpu_custom_call.1} parent=1 // pred_check_branch
      %536 = sbr.rel (0) target = $region33
    $region32: #{tpu_custom_call.1} parent=1 // pred_region
      %538 = dma.done [#allocation4], 128
    $region33: #{tpu_custom_call.1} parent=1 // pred_fallthru
      _
    %539 = vsyncpa [#allocation3], 1
    %540 = vsyncpa [#allocation6], 1
    %541 = vsyncpa [#allocation4], 1

</llo_original>
